<compile_context>
chip_gen: v5e
topology: v5e:2x2
jax: 0.10.0
libtpu: 0.0.40
codegen_flags: <defaults>
</compile_context>

<pallas_src>
import functools

import jax
import jax.numpy as jnp
from jax.experimental import pallas as pl
from jax.experimental.pallas import tpu as pltpu

_BN_EPS = 1e-5
_LANE = 128


def _round_up(n, m):
    return (n + m - 1) // m * m


def _vmem_budget_bytes():
    """~75% of physical VMEM, capped at 100 MiB (v5e/v6e: ~96 MiB, v7x: 48 MiB)."""
    try:
        cap = pltpu.get_tpu_info().vmem_capacity_bytes
    except Exception:
        cap = 64 * 1024 * 1024  # assume the smallest (v7x) if query fails
    return int(min(cap * 3 // 4, 100 * 1024 * 1024))


def _resident_spec(shape):
    """VMEM-resident operand: constant index map, single pipeline buffer."""
    index_map = lambda p, i: (0,) * len(shape)
    if hasattr(pl, "Buffered"):
        try:
            return pl.BlockSpec(shape, index_map, pipeline_mode=pl.Buffered(1))
        except TypeError:
            pass
    return pl.BlockSpec(shape, index_map)


# --------------------------------------------------------------------------
# Kernels
# --------------------------------------------------------------------------
def _proj_head_single_step_kernel(x_ref, w1_ref, gamma_ref, beta_ref, w2_ref,
                                  b2_ref, o_ref, *, inv_n, eps):
    """Whole batch resident: GEMM1 -> stats -> folded BN + ReLU -> GEMM2."""
    h = jnp.dot(x_ref[...], w1_ref[...], preferred_element_type=jnp.float32)
    # sum/sumsq form so zero-padded batch rows contribute nothing (inv_n = 1/B).
    s = jnp.sum(h, axis=0, keepdims=True)
    sq = jnp.sum(h * h, axis=0, keepdims=True)
    mean = s * inv_n
    var = jnp.maximum(sq * inv_n - mean * mean, 0.0)   # biased variance
    scale = gamma_ref[...] * jax.lax.rsqrt(var + eps)
    shift = beta_ref[...] - mean * scale
    h_relu = jnp.maximum(h * scale + shift, 0.0)
    out = jnp.dot(h_relu.astype(jnp.bfloat16), w2_ref[...],
                  preferred_element_type=jnp.float32)
    o_ref[...] = (out + b2_ref[...]).astype(o_ref.dtype)


def _proj_head_two_pass_kernel(x_ref, w1_ref, gamma_ref, beta_ref, w2_ref,
                               b2_ref, o_ref,
                               sum_ref, sumsq_ref, scale_ref, shift_ref,
                               *stash, inv_n, eps):
    """grid = (2, num_tiles): pass 0 accumulates batch stats (and optionally
    stashes h), pass 1 folds BN, applies BN+ReLU and runs GEMM2."""
    has_stash = len(stash) == 1
    p = pl.program_id(0)   # pass index
    i = pl.program_id(1)   # batch-tile index

    @pl.when(p == 0)
    def _stats_pass():
        # GEMM1: bf16 MXU operands, f32 accumulation.  Linear-1 bias omitted:
        # training-mode BatchNorm mean subtraction cancels it exactly.
        h = jnp.dot(x_ref[...], w1_ref[...], preferred_element_type=jnp.float32)

        @pl.when(i == 0)
        def _init():
            sum_ref[...] = jnp.zeros_like(sum_ref)
            sumsq_ref[...] = jnp.zeros_like(sumsq_ref)

        sum_ref[...] += jnp.sum(h, axis=0, keepdims=True)
        sumsq_ref[...] += jnp.sum(h * h, axis=0, keepdims=True)
        if has_stash:
            stash[0][i] = h.astype(jnp.bfloat16)

    @pl.when(p == 1)
    def _apply_pass():
        @pl.when(i == 0)
        def _fold_bn():
            mean = sum_ref[...] * inv_n
            var = jnp.maximum(sumsq_ref[...] * inv_n - mean * mean, 0.0)
            scale = gamma_ref[...] * jax.lax.rsqrt(var + eps)
            scale_ref[...] = scale
            shift_ref[...] = beta_ref[...] - mean * scale

        if has_stash:
            h = stash[0][i].astype(jnp.float32)          # no GEMM1 recompute
        else:
            h = jnp.dot(x_ref[...], w1_ref[...],
                        preferred_element_type=jnp.float32)

        # Folded BN + ReLU in f32 on the VPU (safe on v5e; bf16 path is a
        # possible v6e/v7x micro-opt if VPU-bound).
        h_relu = jnp.maximum(h * scale_ref[...] + shift_ref[...], 0.0)
        out = jnp.dot(h_relu.astype(jnp.bfloat16), w2_ref[...],
                      preferred_element_type=jnp.float32)
        o_ref[...] = (out + b2_ref[...]).astype(o_ref.dtype)


# --------------------------------------------------------------------------
# Wrapper
# --------------------------------------------------------------------------
def projection_head_forward(x, w1, b1, gamma, beta, w2, b2,
                            *, batch_tile=None, eps=_BN_EPS,
                            force_two_pass=False):
    """x: (B, input_dim). w1: (input_dim, hid) == torch weight.T. w2: (hid, out).
    b1/gamma/beta: (1, hid) or (hid,). b2: (1, out) or (out,). Returns (B, out) f32."""
    del b1  # exactly cancelled by training-mode BatchNorm mean subtraction

    B, K = x.shape
    hid = w1.shape[1]
    out_dim = w2.shape[1]

    hid_p = _round_up(hid, _LANE)
    out_p = _round_up(out_dim, _LANE)
    budget = _vmem_budget_bytes()
    inv_n = 1.0 / B

    # Lane-dense zero padding of the feature dims (exact results).
    w1_p = jnp.zeros((K, hid_p), jnp.bfloat16).at[:, :hid].set(
        w1.astype(jnp.bfloat16))
    w2_p = jnp.zeros((hid_p, out_p), jnp.bfloat16).at[:hid, :out_dim].set(
        w2.astype(jnp.bfloat16))
    gamma_p = jnp.zeros((1, hid_p), jnp.float32).at[:, :hid].set(
        gamma.reshape(1, hid))
    beta_p = jnp.zeros((1, hid_p), jnp.float32).at[:, :hid].set(
        beta.reshape(1, hid))
    b2_p = jnp.zeros((1, out_p), jnp.float32).at[:, :out_dim].set(
        b2.reshape(1, out_dim))

    resident_bytes = ((w1_p.size + w2_p.size) * 2
                      + (gamma_p.size + beta_p.size + b2_p.size) * 4)

    # ---------------- small-problem fast path: one grid step ----------------
    B_fast = _round_up(B, 16)
    fast_bytes = resident_bytes + B_fast * (K * 2 + out_p * 4 + hid_p * 6)
    if (not force_two_pass) and B_fast <= 1024 and fast_bytes <= budget // 2:
        x_pad = jnp.zeros((B_fast, K), jnp.bfloat16).at[:B, :].set(
            x.astype(jnp.bfloat16))
        kernel = functools.partial(_proj_head_single_step_kernel,
                                   inv_n=inv_n, eps=eps)
        out_padded = pl.pallas_call(
            kernel,
            out_shape=jax.ShapeDtypeStruct((B_fast, out_p), jnp.float32),
            grid_spec=pltpu.PrefetchScalarGridSpec(
                num_scalar_prefetch=0,
                grid=(1,),
                in_specs=[
                    pl.BlockSpec((B_fast, K), lambda s: (0, 0)),
                    pl.BlockSpec((K, hid_p), lambda s: (0, 0)),
                    pl.BlockSpec((1, hid_p), lambda s: (0, 0)),
                    pl.BlockSpec((1, hid_p), lambda s: (0, 0)),
                    pl.BlockSpec((hid_p, out_p), lambda s: (0, 0)),
                    pl.BlockSpec((1, out_p), lambda s: (0, 0)),
                ],
                out_specs=pl.BlockSpec((B_fast, out_p), lambda s: (0, 0)),
            ),
            compiler_params=pltpu.CompilerParams(
                dimension_semantics=("arbitrary",),
                vmem_limit_bytes=budget),
            cost_estimate=pl.CostEstimate(
                flops=int(2 * B_fast * hid_p * (K + out_p) + 6 * B_fast * hid_p),
                transcendentals=int(hid_p),
                bytes_accessed=int(x_pad.size * 2 + resident_bytes
                                   + B_fast * out_p * 4)),
        )(x_pad, w1_p, gamma_p, beta_p, w2_p, b2_p)
        return out_padded[:B, :out_dim]

    # ---------------- general streamed two-pass path ----------------
    # Per-row streamed VMEM: x tile (bf16, 2 buffers) + out tile (f32, 2 buffers).
    per_row = 2 * K * 2 + 2 * out_p * 4
    scratch_fixed = 4 * hid_p * 4
    if batch_tile is None:
        avail = max(budget - resident_bytes - scratch_fixed, per_row * 16)
        bt = max(16, min(2048, avail // per_row))
        bt = (bt // 16) * 16
        batch_tile = max(16, min(bt, _round_up(B, 16)))
    assert batch_tile % 16 == 0, "batch_tile must be sublane-aligned for bf16"

    B_pad = _round_up(B, batch_tile)
    num_tiles = B_pad // batch_tile
    x_pad = jnp.zeros((B_pad, K), jnp.bfloat16).at[:B, :].set(
        x.astype(jnp.bfloat16))

    # h-stash: skip GEMM1 recompute in pass 1 when it fits the VMEM budget.
    stash_bytes = B_pad * hid_p * 2
    use_stash = (resident_bytes + scratch_fixed + batch_tile * per_row
                 + stash_bytes) <= (budget * 85) // 100

    if use_stash:
        # x is only needed in pass 0; collapse its pass-1 block index to 0.
        x_map = lambda p, i: (i * (1 - p), 0)
    else:
        x_map = lambda p, i: (i, 0)

    scratch = [
        pltpu.VMEM((1, hid_p), jnp.float32),   # sum(h)
        pltpu.VMEM((1, hid_p), jnp.float32),   # sum(h*h)
        pltpu.VMEM((1, hid_p), jnp.float32),   # folded BN scale
        pltpu.VMEM((1, hid_p), jnp.float32),   # folded BN shift
    ]
    if use_stash:
        scratch.append(pltpu.VMEM((num_tiles, batch_tile, hid_p), jnp.bfloat16))

    kernel = functools.partial(_proj_head_two_pass_kernel, inv_n=inv_n, eps=eps)

    gemm1_passes = 1 if use_stash else 2
    flops = int(2 * B_pad * K * hid_p * gemm1_passes
                + 2 * B_pad * hid_p * out_p + 6 * B_pad * hid_p)
    bytes_accessed = int(x_pad.size * 2 * gemm1_passes + resident_bytes
                         + B_pad * out_p * 4)

    def _call(buffered_resident):
        if buffered_resident:
            res = _resident_spec
        else:
            res = lambda shape: pl.BlockSpec(shape,
                                             lambda p, i: (0,) * len(shape))
        return pl.pallas_call(
            kernel,
            out_shape=jax.ShapeDtypeStruct((B_pad, out_p), jnp.float32),
            grid_spec=pltpu.PrefetchScalarGridSpec(
                num_scalar_prefetch=0,
                grid=(2, num_tiles),
                in_specs=[
                    pl.BlockSpec((batch_tile, K), x_map),   # x tile (streamed)
                    res((K, hid_p)),                        # W1 (resident)
                    res((1, hid_p)),                        # gamma
                    res((1, hid_p)),                        # beta
                    res((hid_p, out_p)),                    # W2
                    res((1, out_p)),                        # b2
                ],
                # Block 0 for all of pass 0 (no writeback of uninitialized
                # tiles), real tile index in pass 1.
                out_specs=pl.BlockSpec((batch_tile, out_p),
                                       lambda p, i: (p * i, 0)),
                scratch_shapes=scratch,
            ),
            compiler_params=pltpu.CompilerParams(
                # Both axes sequential: pass 1 needs full-batch BN stats from
                # pass 0, and stats accumulate into a single VMEM scratch.
                dimension_semantics=("arbitrary", "arbitrary"),
                vmem_limit_bytes=budget),
            cost_estimate=pl.CostEstimate(
                flops=flops, transcendentals=int(hid_p),
                bytes_accessed=bytes_accessed),
        )(x_pad, w1_p, gamma_p, beta_p, w2_p, b2_p)

    try:
        out_padded = _call(True)
    except Exception:
        # Fallback if single-buffered resident specs are rejected by this
        # jax/Mosaic version; correctness is identical, VMEM use is higher.
        out_padded = _call(False)

    return out_padded[:B, :out_dim]


# --------------------------------------------------------------------------
# Demo / self-test
# --------------------------------------------------------------------------
def _torch_linear_init(key, fan_in, fan_out):
    """nn.Linear default init: U(-1/sqrt(fan_in), 1/sqrt(fan_in))."""
    kw, kb = jax.random.split(key)
    bound = 1.0 / jnp.sqrt(fan_in)
    w = jax.random.uniform(kw, (fan_in, fan_out), jnp.float32, -bound, bound)
    b = jax.random.uniform(kb, (1, fan_out), jnp.float32, -bound, bound)
    return w, b


if __name__ == "__main__":
    batch, input_dim, hid_dim, out_dim = 64, 32, 64, 16

    key = jax.random.PRNGKey(0)
    kx, k1, k2 = jax.random.split(key, 3)

    x = jax.random.normal(kx, (batch, input_dim), jnp.float32)
    w1, b1 = _torch_linear_init(k1, input_dim, hid_dim)
    w2, b2 = _torch_linear_init(k2, hid_dim, out_dim)
    gamma = jnp.ones((1, hid_dim), jnp.float32)   # BatchNorm1d affine defaults
    beta = jnp.zeros((1, hid_dim), jnp.float32)

    # Pure-JAX f32 reference (PyTorch training-mode BN: biased variance).
    h_ref = x @ w1 + b1
    mean = jnp.mean(h_ref, axis=0, keepdims=True)
    var = jnp.mean((h_ref - mean) ** 2, axis=0, keepdims=True)
    h_ref = (h_ref - mean) / jnp.sqrt(var + 1e-5) * gamma + beta
    ref = jnp.maximum(h_ref, 0.0) @ w2 + b2

    # 1) small-problem fast path (single grid step).
    out_fast = jax.block_until_ready(
        projection_head_forward(x, w1, b1, gamma, beta, w2, b2))
    assert out_fast.shape == (batch, out_dim)
    err_fast = float(jnp.max(jnp.abs(out_fast - ref)))
    assert jnp.allclose(out_fast, ref, atol=5e-2, rtol=5e-2), \
        f"fast-path mismatch (max abs err {err_fast})"

    # 2) general two-pass streamed path (forced; exercises stats + h-stash).
    out_stream = jax.block_until_ready(
        projection_head_forward(x, w1, b1, gamma, beta, w2, b2,
                                batch_tile=16, force_two_pass=True))
    assert out_stream.shape == (batch, out_dim)
    err_stream = float(jnp.max(jnp.abs(out_stream - ref)))
    assert jnp.allclose(out_stream, ref, atol=5e-2, rtol=5e-2), \
        f"two-pass mismatch (max abs err {err_stream})"

    print("KERNEL_OK")
</pallas_src>

<mosaic_0001>
module attributes {stable_mosaic.version = 11 : i64} {
  func.func @_proj_head_single_step_kernel(%arg0: i32, %arg1: memref<64x32xbf16, #tpu.memory_space<vmem>>, %arg2: memref<32x128xbf16, #tpu.memory_space<vmem>>, %arg3: memref<1x128xf32, #tpu.memory_space<vmem>>, %arg4: memref<1x128xf32, #tpu.memory_space<vmem>>, %arg5: memref<128x128xbf16, #tpu.memory_space<vmem>>, %arg6: memref<1x128xf32, #tpu.memory_space<vmem>>, %arg7: memref<64x128xf32, #tpu.memory_space<vmem>>) attributes {dimension_semantics = [#tpu.dimension_semantics<arbitrary>], iteration_bounds = array<i64: 1>, scalar_prefetch = 0 : i64, scratch_operands = 0 : i64, tpu.core_type = #tpu.core_type<tc>, window_params = [{pipeline_mode = #tpu.pipeline_mode<synchronous>, transform_indices = @transform_0, window_bounds = array<i64: 64, 32>}, {pipeline_mode = #tpu.pipeline_mode<synchronous>, transform_indices = @transform_1, window_bounds = array<i64: 32, 128>}, {pipeline_mode = #tpu.pipeline_mode<synchronous>, transform_indices = @transform_2, window_bounds = array<i64: 1, 128>}, {pipeline_mode = #tpu.pipeline_mode<synchronous>, transform_indices = @transform_3, window_bounds = array<i64: 1, 128>}, {pipeline_mode = #tpu.pipeline_mode<synchronous>, transform_indices = @transform_4, window_bounds = array<i64: 128, 128>}, {pipeline_mode = #tpu.pipeline_mode<synchronous>, transform_indices = @transform_5, window_bounds = array<i64: 1, 128>}, {pipeline_mode = #tpu.pipeline_mode<synchronous>, transform_indices = @transform_6, window_bounds = array<i64: 64, 128>}]} {
    %c0 = arith.constant 0 : index
    %c0_0 = arith.constant 0 : index
    %0 = vector.load %arg1[%c0, %c0_0] : memref<64x32xbf16, #tpu.memory_space<vmem>>, vector<64x32xbf16>
    %c0_1 = arith.constant 0 : index
    %c0_2 = arith.constant 0 : index
    %1 = vector.load %arg2[%c0_1, %c0_2] : memref<32x128xbf16, #tpu.memory_space<vmem>>, vector<32x128xbf16>
    %cst = arith.constant dense<0.000000e+00> : vector<64x128xf32>
    %2 = tpu.matmul %0, %1, %cst {dimension_numbers = #tpu.dot_dimension_numbers<[1], [0], [0], [1], [0, 0, 1, 1], [], []>} : vector<64x32xbf16>, vector<32x128xbf16>, vector<64x128xf32> -> vector<64x128xf32>
    %cst_3 = arith.constant dense<0.000000e+00> : vector<128xf32>
    %3 = vector.multi_reduction <add>, %2, %cst_3 [0] : vector<64x128xf32> to vector<128xf32>
    %4 = vector.shape_cast %3 : vector<128xf32> to vector<1x128xf32>
    %5 = arith.mulf %2, %2 : vector<64x128xf32>
    %cst_4 = arith.constant dense<0.000000e+00> : vector<128xf32>
    %6 = vector.multi_reduction <add>, %5, %cst_4 [0] : vector<64x128xf32> to vector<128xf32>
    %7 = vector.shape_cast %6 : vector<128xf32> to vector<1x128xf32>
    %cst_5 = arith.constant 1.562500e-02 : f32
    %8 = vector.broadcast %cst_5 : f32 to vector<1x128xf32>
    %9 = arith.mulf %4, %8 : vector<1x128xf32>
    %cst_6 = arith.constant 1.562500e-02 : f32
    %10 = vector.broadcast %cst_6 : f32 to vector<1x128xf32>
    %11 = arith.mulf %7, %10 : vector<1x128xf32>
    %12 = arith.mulf %9, %9 : vector<1x128xf32>
    %13 = arith.subf %11, %12 : vector<1x128xf32>
    %cst_7 = arith.constant 0.000000e+00 : f32
    %14 = vector.broadcast %cst_7 : f32 to vector<1x128xf32>
    %15 = arith.maximumf %13, %14 : vector<1x128xf32>
    %c0_8 = arith.constant 0 : index
    %c0_9 = arith.constant 0 : index
    %16 = vector.load %arg3[%c0_8, %c0_9] : memref<1x128xf32, #tpu.memory_space<vmem>>, vector<1x128xf32>
    %cst_10 = arith.constant 9.99999974E-6 : f32
    %17 = vector.broadcast %cst_10 : f32 to vector<1x128xf32>
    %18 = arith.addf %15, %17 : vector<1x128xf32>
    %19 = math.rsqrt %18 : vector<1x128xf32>
    %20 = arith.mulf %16, %19 : vector<1x128xf32>
    %c0_11 = arith.constant 0 : index
    %c0_12 = arith.constant 0 : index
    %21 = vector.load %arg4[%c0_11, %c0_12] : memref<1x128xf32, #tpu.memory_space<vmem>>, vector<1x128xf32>
    %22 = arith.mulf %9, %20 : vector<1x128xf32>
    %23 = arith.subf %21, %22 : vector<1x128xf32>
    %24 = vector.broadcast %20 : vector<1x128xf32> to vector<64x128xf32>
    %25 = arith.mulf %2, %24 : vector<64x128xf32>
    %26 = vector.broadcast %23 : vector<1x128xf32> to vector<64x128xf32>
    %27 = arith.addf %25, %26 : vector<64x128xf32>
    %cst_13 = arith.constant 0.000000e+00 : f32
    %28 = vector.broadcast %cst_13 : f32 to vector<64x128xf32>
    %29 = arith.maximumf %27, %28 : vector<64x128xf32>
    %30 = arith.truncf %29 : vector<64x128xf32> to vector<64x128xbf16>
    %c0_14 = arith.constant 0 : index
    %c0_15 = arith.constant 0 : index
    %31 = vector.load %arg5[%c0_14, %c0_15] : memref<128x128xbf16, #tpu.memory_space<vmem>>, vector<128x128xbf16>
    %cst_16 = arith.constant dense<0.000000e+00> : vector<64x128xf32>
    %32 = tpu.matmul %30, %31, %cst_16 {dimension_numbers = #tpu.dot_dimension_numbers<[1], [0], [0], [1], [0, 0, 1, 1], [], []>} : vector<64x128xbf16>, vector<128x128xbf16>, vector<64x128xf32> -> vector<64x128xf32>
    %c0_17 = arith.constant 0 : index
    %c0_18 = arith.constant 0 : index
    %33 = vector.load %arg6[%c0_17, %c0_18] : memref<1x128xf32, #tpu.memory_space<vmem>>, vector<1x128xf32>
    %34 = vector.broadcast %33 : vector<1x128xf32> to vector<64x128xf32>
    %35 = arith.addf %32, %34 : vector<64x128xf32>
    %c0_19 = arith.constant 0 : index
    %c0_20 = arith.constant 0 : index
    %36 = vector.load %arg7[%c0_19, %c0_20] : memref<64x128xf32, #tpu.memory_space<vmem>>, vector<64x128xf32>
    tpu.vector_store %arg7[%c0_19, %c0_20], %35 {strides = array<i32>} : memref<64x128xf32, #tpu.memory_space<vmem>>, vector<64x128xf32>,
    return
  }
  func.func @transform_0(%arg0: i32) -> (i32, i32) {
    %c0_i32 = arith.constant 0 : i32
    %c0_i32_0 = arith.constant 0 : i32
    %c0_i32_1 = arith.constant 0 : i32
    return %c0_i32, %c0_i32_0 : i32, i32
  }
  func.func @transform_1(%arg0: i32) -> (i32, i32) {
    %c0_i32 = arith.constant 0 : i32
    %c0_i32_0 = arith.constant 0 : i32
    %c0_i32_1 = arith.constant 0 : i32
    return %c0_i32, %c0_i32_0 : i32, i32
  }
  func.func @transform_2(%arg0: i32) -> (i32, i32) {
    %c0_i32 = arith.constant 0 : i32
    %c0_i32_0 = arith.constant 0 : i32
    %c0_i32_1 = arith.constant 0 : i32
    return %c0_i32, %c0_i32_0 : i32, i32
  }
  func.func @transform_3(%arg0: i32) -> (i32, i32) {
    %c0_i32 = arith.constant 0 : i32
    %c0_i32_0 = arith.constant 0 : i32
    %c0_i32_1 = arith.constant 0 : i32
    return %c0_i32, %c0_i32_0 : i32, i32
  }
  func.func @transform_4(%arg0: i32) -> (i32, i32) {
    %c0_i32 = arith.constant 0 : i32
    %c0_i32_0 = arith.constant 0 : i32
    %c0_i32_1 = arith.constant 0 : i32
    return %c0_i32, %c0_i32_0 : i32, i32
  }
  func.func @transform_5(%arg0: i32) -> (i32, i32) {
    %c0_i32 = arith.constant 0 : i32
    %c0_i32_0 = arith.constant 0 : i32
    %c0_i32_1 = arith.constant 0 : i32
    return %c0_i32, %c0_i32_0 : i32, i32
  }
  func.func @transform_6(%arg0: i32) -> (i32, i32) {
    %c0_i32 = arith.constant 0 : i32
    %c0_i32_0 = arith.constant 0 : i32
    %c0_i32_1 = arith.constant 0 : i32
    return %c0_i32, %c0_i32_0 : i32, i32
  }
}

</mosaic_0001>

<llo_original>
// kernel: tpu_custom_call.1
$region0: #{tpu_custom_call.1}
  #allocation0 [shape = 'u32[]', space=smem, size = 0x4, offset = 0x4, fixed_abs, tag = 'smem constant byte address 0x4 - core index']
  #allocation1 [shape = 'u32[72,128]{1,0:T(1,128)}', space=vmem, size = 0x9000, scoped, tag = 'internal scratch']
  %s0 = inlined_call_operand.vmem [shape: bf16[64,32], index: 0, kind: input, shape index: {}]
  %s1 = inlined_call_operand.vmem [shape: bf16[32,128], index: 1, kind: input, shape index: {}]
  %s2 = inlined_call_operand.vmem [shape: f32[1,128], index: 2, kind: input, shape index: {}]
  %s3 = inlined_call_operand.vmem [shape: f32[1,128], index: 3, kind: input, shape index: {}]
  %s4 = inlined_call_operand.hbm [shape: bf16[128,128], index: 4, kind: input, shape index: {}]
  %s5 = inlined_call_operand.vmem [shape: f32[1,128], index: 5, kind: input, shape index: {}]
  %s6 = inlined_call_operand.hbm [shape: f32[64,128], index: 6, kind: output, shape index: {}]
  %s7 = sld [smem:[#allocation0]]
  $region38: #{tpu_custom_call.1} parent=0
    _
  %s9 = ssub.s32 1, %s7
  %s10 = scalar_select 0, %s9, %s7
  $region1: #{tpu_custom_call.1} parent=0
    #allocation2 [shape = 'u8[32768]{0}', space=vmem, size = 0x8000, scoped, tag = 'input window, operand 4, single buffered']
    #allocation3 [shape = 's32[1]{0}', space=sflag, size = 0x4, scoped, tag = 'scoped memory for tpu_custom_call.1']
    #allocation4 [shape = 's32[1]{0}', space=sflag, size = 0x4, scoped, tag = 'scoped memory for tpu_custom_call.1']
    #allocation5 [shape = 'u8[32768]{0}', space=vmem, size = 0x8000, scoped, tag = 'output window, operand 0, single buffered']
    %11 = vsyncpa [#allocation3], 0
    %12 = vsyncpa [#allocation4], 0
    // Predicated region
    $region2: #{tpu_custom_call.1} parent=1 // pred_check
      _
    $region3: #{tpu_custom_call.1} parent=1 // pred_check_branch
      %14 = sbr.rel (0) target = $region5
    $region4: #{tpu_custom_call.1} parent=1 // pred_region
      _
    $region5: #{tpu_custom_call.1} parent=1 // pred_fallthru
      _
    // Predicated region
    $region6: #{tpu_custom_call.1} parent=1 // pred_check
      _
    $region7: #{tpu_custom_call.1} parent=1 // pred_check_branch
      %16 = sbr.rel (0) target = $region9
    $region8: #{tpu_custom_call.1} parent=1 // pred_region
      _
    $region9: #{tpu_custom_call.1} parent=1 // pred_fallthru
      _
    // Predicated region
    $region10: #{tpu_custom_call.1} parent=1 // pred_check
      _
    $region11: #{tpu_custom_call.1} parent=1 // pred_check_branch
      %18 = sbr.rel (0) target = $region13
    $region12: #{tpu_custom_call.1} parent=1 // pred_region
      _
    $region13: #{tpu_custom_call.1} parent=1 // pred_fallthru
      _
    // Predicated region
    $region14: #{tpu_custom_call.1} parent=1 // pred_check
      _
    $region15: #{tpu_custom_call.1} parent=1 // pred_check_branch
      %20 = sbr.rel (0) target = $region17
    $region16: #{tpu_custom_call.1} parent=1 // pred_region
      _
    $region17: #{tpu_custom_call.1} parent=1 // pred_fallthru
      _
    // Predicated region
    $region18: #{tpu_custom_call.1} parent=1 // pred_check
      _
    $region19: #{tpu_custom_call.1} parent=1 // pred_check_branch
      %22 = sbr.rel (0) target = $region21
    $region20: #{tpu_custom_call.1} parent=1 // pred_region
      %24 = vsyncadd [#allocation3], 0
      %s25 = sshll.u32 %s4, 4
      %s26 = int_to_ptr.hbm [resolvable:$true] %s25
      %s27 = sshll.u32 [#allocation2], 4
      %s28 = int_to_ptr.vmem [resolvable:$true] %s27
      %33 = dma.hbm_to_vmem [thread:$0]  %s26, 1024, %s28, [#allocation3], 64, 64, 4
    $region21: #{tpu_custom_call.1} parent=1 // pred_fallthru
      _
    // Predicated region
    $region22: #{tpu_custom_call.1} parent=1 // pred_check
      _
    $region23: #{tpu_custom_call.1} parent=1 // pred_check_branch
      %35 = sbr.rel (0) target = $region25
    $region24: #{tpu_custom_call.1} parent=1 // pred_region
      _
    $region25: #{tpu_custom_call.1} parent=1 // pred_fallthru
      _
    // Predicated region
    $region26: #{tpu_custom_call.1} parent=1 // pred_check
      _
    $region27: #{tpu_custom_call.1} parent=1 // pred_check_branch
      %37 = sbr.rel (0) target = $region29
    $region28: #{tpu_custom_call.1} parent=1 // pred_region
      %39 = dma.done [#allocation3], 1024
    $region29: #{tpu_custom_call.1} parent=1 // pred_fallthru
      _
    %v41 = vld [vmem:[%s0] sm:$0xf]
    %v42 = vld [vmem:[%s0 + $0x4] sm:$0xf]
    %v43 = vld [vmem:[%s0 + $0x8] sm:$0xf]
    %v44 = vld [vmem:[%s0 + $0xc] sm:$0xf]
    %v45 = vld [vmem:[%s0 + $0x10] sm:$0xf]
    %v46 = vld [vmem:[%s0 + $0x14] sm:$0xf]
    %v47 = vld [vmem:[%s0 + $0x18] sm:$0xf]
    %v48 = vld [vmem:[%s0 + $0x1c] sm:$0xf]
    %v49 = vld [vmem:[%s1] sm:$0xf]
    %v50 = vld [vmem:[%s1 + $0x4] sm:$0xf]
    %v51 = vld [vmem:[%s1 + $0x8] sm:$0xf]
    %v52 = vld [vmem:[%s1 + $0xc] sm:$0xf]
    %v61 = vunpack.c.l.b16 %v41
    %v62 = vunpack.c.l.b16 %v42
    %v63 = vunpack.c.l.b16 %v43
    %v64 = vunpack.c.l.b16 %v44
    %v65 = vunpack.c.l.b16 %v45
    %v66 = vunpack.c.l.b16 %v46
    %v67 = vunpack.c.l.b16 %v47
    %v68 = vunpack.c.l.b16 %v48
    %v69 = vpack.c.b16 %v62, %v61
    %v70 = vpack.c.b16 %v64, %v63
    %v71 = vpack.c.b16 %v66, %v65
    %v72 = vpack.c.b16 %v68, %v67
    %v77 = vunpack.c.l.b16 %v49
    %v78 = vunpack.c.l.b16 %v50
    %v79 = vunpack.c.l.b16 %v51
    %v80 = vunpack.c.l.b16 %v52
    %v81 = vpack.c.b16 %v78, %v77
    %v82 = vpack.c.b16 %v80, %v79
    %vm85 = vcmask 261120
    %v87 = vsel %vm85, %v69, 0
    %v90 = vsel %vm85, %v70, 0
    %v93 = vsel %vm85, %v71, 0
    %v96 = vsel %vm85, %v72, 0
    %98 = vmatpush.bf16.msra.mxu0 0
    %99 = vmatpush.bf16.msra.mxu0 0
    %100 = vmatpush.bf16.msra.mxu0 0
    %101 = vmatpush.bf16.msra.mxu0 0
    %102 = vmatpush.bf16.msra.mxu0 0
    %103 = vmatpush.bf16.msra.mxu0 0
    %104 = vmatpush.bf16.msra.mxu0 %v82
    %105 = vmatpush.bf16.msra.mxu0 %v81
    %106 = vmatmul.bf16.gmra.mxu0 %v87
    %v107 = vpop.f32.mrf.mxu0
    %v108 = vadd.f32 0.0, %v107
    %v109 = vpop.f32.mrf.mxu0
    %v110 = vadd.f32 0.0, %v109
    %111 = vmatmul.bf16.gmra.mxu0 %v90
    %v112 = vpop.f32.mrf.mxu0
    %v113 = vadd.f32 0.0, %v112
    %v114 = vpop.f32.mrf.mxu0
    %v115 = vadd.f32 0.0, %v114
    %116 = vmatmul.bf16.gmra.mxu0 %v93
    %v117 = vpop.f32.mrf.mxu0
    %v118 = vadd.f32 0.0, %v117
    %v119 = vpop.f32.mrf.mxu0
    %v120 = vadd.f32 0.0, %v119
    %121 = vmatmul.bf16.gmra.mxu0 %v96
    %v122 = vpop.f32.mrf.mxu0
    %v123 = vadd.f32 0.0, %v122
    %v124 = vpop.f32.mrf.mxu0
    %v125 = vadd.f32 0.0, %v124
    %126 = vdwg.mxu0
    %v127 = vadd.f32 %v108, %v110
    %v128 = vadd.f32 %v127, %v113
    %v129 = vadd.f32 %v128, %v115
    %v130 = vadd.f32 %v129, %v118
    %v131 = vadd.f32 %v130, %v120
    %v132 = vadd.f32 %v131, %v123
    %v133 = vadd.f32 %v132, %v125
    %v134 = vrot.slane %v133, 4
    %v135 = vadd.f32 %v133, %v134
    %v136 = vrot.slane %v135, 2
    %v137 = vadd.f32 %v135, %v136
    %v138 = vrot.slane %v137, 1
    %v139 = vadd.f32 %v137, %v138
    %v140 = vmul.f32 %v108, %v108
    %v141 = vmul.f32 %v110, %v110
    %v142 = vmul.f32 %v113, %v113
    %v143 = vmul.f32 %v115, %v115
    %v144 = vmul.f32 %v118, %v118
    %v145 = vmul.f32 %v120, %v120
    %v146 = vmul.f32 %v123, %v123
    %v147 = vmul.f32 %v125, %v125
    %v148 = vadd.f32 %v140, %v141
    %v149 = vadd.f32 %v148, %v142
    %v150 = vadd.f32 %v149, %v143
    %v151 = vadd.f32 %v150, %v144
    %v152 = vadd.f32 %v151, %v145
    %v153 = vadd.f32 %v152, %v146
    %v154 = vadd.f32 %v153, %v147
    %v155 = vrot.slane %v154, 4
    %v156 = vadd.f32 %v154, %v155
    %v157 = vrot.slane %v156, 2
    %v158 = vadd.f32 %v156, %v157
    %v159 = vrot.slane %v158, 1
    %v160 = vadd.f32 %v158, %v159
    %v161 = vmul.f32 %v139, 0.015625
    %v162 = vmul.f32 %v160, 0.015625
    %v163 = vmul.f32 %v161, %v161
    %v164 = vsub.f32 %v162, %v163
    %v165 = vmax.f32 %v164, 0.0
    %v166 = vld [vmem:[%s2] sm:$0x1]
    %v167 = vadd.f32 %v165, 1e-05
    %v168 = vrsqrt.pop %v167
    %v169 = vmul.f32 %v168, %v167
    %v170 = vmul.f32 %v169, %v168
    %v171 = vmul.f32 0.5, %v170
    %v172 = vsub.f32 1.5, %v171
    %v173 = vmul.f32 %v168, %v172
    %vm174 = vweird.f32 %v167
    %vm175 = vweird.f32 %v168
    %vm176 = vmor %vm174, %vm175
    %v177 = vsel %vm176, %v168, %v173
    %v178 = vmul.f32 %v166, %v177
    %v179 = vld [vmem:[%s3] sm:$0x1]
    %v180 = vmul.f32 %v161, %v178
    %v181 = vsub.f32 %v179, %v180
    %v183 = vperm.slane %v178, 0
    %v185 = vmul.f32 %v108, %v183
    %v186 = vmul.f32 %v110, %v183
    %v187 = vmul.f32 %v113, %v183
    %v188 = vmul.f32 %v115, %v183
    %v189 = vmul.f32 %v118, %v183
    %v190 = vmul.f32 %v120, %v183
    %v191 = vmul.f32 %v123, %v183
    %v192 = vmul.f32 %v125, %v183
    %v194 = vperm.slane %v181, 0
    %v196 = vadd.f32 %v185, %v194
    %v197 = vadd.f32 %v186, %v194
    %v198 = vadd.f32 %v187, %v194
    %v199 = vadd.f32 %v188, %v194
    %v200 = vadd.f32 %v189, %v194
    %v201 = vadd.f32 %v190, %v194
    %v202 = vadd.f32 %v191, %v194
    %v203 = vadd.f32 %v192, %v194
    %v204 = vmax.f32 %v196, 0.0
    %v205 = vmax.f32 %v197, 0.0
    %v206 = vmax.f32 %v198, 0.0
    %v207 = vmax.f32 %v199, 0.0
    %v208 = vmax.f32 %v200, 0.0
    %v209 = vmax.f32 %v201, 0.0
    %v210 = vmax.f32 %v202, 0.0
    %v211 = vmax.f32 %v203, 0.0
    %v212 = vpack.c.bf16 %v205, %v204
    %v213 = vpack.c.bf16 %v207, %v206
    %v214 = vpack.c.bf16 %v209, %v208
    %v215 = vpack.c.bf16 %v211, %v210
    %v216 = vld [vmem:[#allocation2] sm:$0xf]
    %v217 = vld [vmem:[#allocation2 + $0x4] sm:$0xf]
    %v218 = vld [vmem:[#allocation2 + $0x8] sm:$0xf]
    %v219 = vld [vmem:[#allocation2 + $0xc] sm:$0xf]
    %v220 = vld [vmem:[#allocation2 + $0x10] sm:$0xf]
    %v221 = vld [vmem:[#allocation2 + $0x14] sm:$0xf]
    %v222 = vld [vmem:[#allocation2 + $0x18] sm:$0xf]
    %v223 = vld [vmem:[#allocation2 + $0x1c] sm:$0xf]
    %v224 = vld [vmem:[#allocation2 + $0x20] sm:$0xf]
    %v225 = vld [vmem:[#allocation2 + $0x24] sm:$0xf]
    %v226 = vld [vmem:[#allocation2 + $0x28] sm:$0xf]
    %v227 = vld [vmem:[#allocation2 + $0x2c] sm:$0xf]
    %v228 = vld [vmem:[#allocation2 + $0x30] sm:$0xf]
    %v229 = vld [vmem:[#allocation2 + $0x34] sm:$0xf]
    %v230 = vld [vmem:[#allocation2 + $0x38] sm:$0xf]
    %v231 = vld [vmem:[#allocation2 + $0x3c] sm:$0xf]
    %v232 = vld [vmem:[%s5] sm:$0x1]
    %v234 = vperm.slane %v232, 0
    %v252 = vunpack.c.l.b16 %v216
    %v253 = vunpack.c.l.b16 %v217
    %v254 = vunpack.c.l.b16 %v218
    %v255 = vunpack.c.l.b16 %v219
    %v256 = vunpack.c.l.b16 %v220
    %v257 = vunpack.c.l.b16 %v221
    %v258 = vunpack.c.l.b16 %v222
    %v259 = vunpack.c.l.b16 %v223
    %v260 = vunpack.c.l.b16 %v224
    %v261 = vunpack.c.l.b16 %v225
    %v262 = vunpack.c.l.b16 %v226
    %v263 = vunpack.c.l.b16 %v227
    %v264 = vunpack.c.l.b16 %v228
    %v265 = vunpack.c.l.b16 %v229
    %v266 = vunpack.c.l.b16 %v230
    %v267 = vunpack.c.l.b16 %v231
    %v268 = vpack.c.b16 %v253, %v252
    %v269 = vpack.c.b16 %v255, %v254
    %v270 = vpack.c.b16 %v257, %v256
    %v271 = vpack.c.b16 %v259, %v258
    %v272 = vpack.c.b16 %v261, %v260
    %v273 = vpack.c.b16 %v263, %v262
    %v274 = vpack.c.b16 %v265, %v264
    %v275 = vpack.c.b16 %v267, %v266
    %284 = vmatpush.bf16.msra.mxu0 %v275
    %285 = vmatpush.bf16.msra.mxu0 %v274
    %286 = vmatpush.bf16.msra.mxu0 %v273
    %287 = vmatpush.bf16.msra.mxu0 %v272
    %288 = vmatpush.bf16.msra.mxu0 %v271
    %289 = vmatpush.bf16.msra.mxu0 %v270
    %290 = vmatpush.bf16.msra.mxu0 %v269
    %291 = vmatpush.bf16.msra.mxu0 %v268
    %292 = vmatmul.bf16.gmra.mxu0 %v212
    %v293 = vpop.f32.mrf.mxu0
    %v294 = vadd.f32 %v234, %v293
    %v295 = vpop.f32.mrf.mxu0
    %v296 = vadd.f32 %v234, %v295
    %297 = vmatmul.bf16.gmra.mxu0 %v213
    %v298 = vpop.f32.mrf.mxu0
    %v299 = vadd.f32 %v234, %v298
    %v300 = vpop.f32.mrf.mxu0
    %v301 = vadd.f32 %v234, %v300
    %302 = vmatmul.bf16.gmra.mxu0 %v214
    %v303 = vpop.f32.mrf.mxu0
    %v304 = vadd.f32 %v234, %v303
    %v305 = vpop.f32.mrf.mxu0
    %v306 = vadd.f32 %v234, %v305
    %307 = vmatmul.bf16.gmra.mxu0 %v215
    %v308 = vpop.f32.mrf.mxu0
    %v309 = vadd.f32 %v234, %v308
    %v310 = vpop.f32.mrf.mxu0
    %v311 = vadd.f32 %v234, %v310
    %312 = vdwg.mxu0
    %313 = vst [vmem:[#allocation5] sm:$0xff] %v294
    %314 = vst [vmem:[#allocation5 + $0x8] sm:$0xff] %v296
    %315 = vst [vmem:[#allocation5 + $0x10] sm:$0xff] %v299
    %316 = vst [vmem:[#allocation5 + $0x18] sm:$0xff] %v301
    %317 = vst [vmem:[#allocation5 + $0x20] sm:$0xff] %v304
    %318 = vst [vmem:[#allocation5 + $0x28] sm:$0xff] %v306
    %319 = vst [vmem:[#allocation5 + $0x30] sm:$0xff] %v309
    %320 = vst [vmem:[#allocation5 + $0x38] sm:$0xff] %v311
    // Predicated region
    $region30: #{tpu_custom_call.1} parent=1 // pred_check
      _
    $region31: #{tpu_custom_call.1} parent=1 // pred_check_branch
      %322 = sbr.rel (0) target = $region33
    $region32: #{tpu_custom_call.1} parent=1 // pred_region
      %324 = vsyncadd [#allocation4], 0
      %s325 = sshll.u32 [#allocation5], 4
      %s326 = int_to_ptr.vmem [resolvable:$true] %s325
      %s327 = sshll.u32 %s6, 4
      %s328 = int_to_ptr.hbm [resolvable:$true] %s327
      %333 = dma.vmem_to_hbm [thread:$0]  %s326, 1024, %s328, [#allocation4], 128, 128, 8
    $region33: #{tpu_custom_call.1} parent=1 // pred_fallthru
      _
    // Predicated region
    $region34: #{tpu_custom_call.1} parent=1 // pred_check
      _
    $region35: #{tpu_custom_call.1} parent=1 // pred_check_branch
      %335 = sbr.rel (0) target = $region37
    $region36: #{tpu_custom_call.1} parent=1 // pred_region
      %337 = dma.done [#allocation4], 1024
    $region37: #{tpu_custom_call.1} parent=1 // pred_fallthru
      _
    %338 = vsyncpa [#allocation3], 1
    %339 = vsyncpa [#allocation4], 1

</llo_original>
